<compile_context>
chip_gen: v6e
topology: v6e:2x2x1
jax: 0.10.0
libtpu: 0.0.40
codegen_flags: <defaults>
</compile_context>

<pallas_src>
import jax
import jax.numpy as jnp
from jax.experimental import pallas as pl
from jax.experimental.pallas import tpu as pltpu

LN_EPS = 1e-5                         # PyTorch nn.LayerNorm default eps
_VMEM_BUDGET_CAP = 44 * 1024 * 1024   # working-set budget cap (v5e/v6e)
_ROWS_PER_STEP_TARGET = 1024          # merged rows per grid step (HBM roofline knee)
_MIN_GRID_STEPS = 8                   # keep the pipeline (and both v7x TCs) busy


# ---------------------------------------------------------------------------
# Hardware-aware VMEM helpers
# ---------------------------------------------------------------------------
def _vmem_capacity_bytes():
    """Per-core VMEM capacity; falls back to 128 MiB (v5e/v6e) if unknown."""
    try:
        cap = int(pltpu.get_tpu_info().vmem_capacity_bytes)
        if cap > 0:
            return cap
    except Exception:
        pass
    return 128 * 1024 * 1024


def _vmem_budget(vmem_cap):
    # ~27 MiB working set on v7x (64 MiB VMEM), 44 MiB on v5e/v6e (128 MiB).
    return min(_VMEM_BUDGET_CAP, int(0.42 * vmem_cap))


def _vmem_limit(vmem_cap, est_bytes):
    # Leave headroom for Mosaic-internal scratch: never ask for >85% of VMEM.
    return int(min(0.85 * vmem_cap, max(32 << 20, 1.35 * est_bytes)))


def _const_spec(shape, single_buffer):
    """BlockSpec for a grid-invariant operand (weights / bias)."""
    index_map = lambda i: (0,) * len(shape)
    if single_buffer:
        # Constant blocks are never re-fetched; one buffer is enough.
        return pl.BlockSpec(shape, index_map, pipeline_mode=pl.Buffered(1))
    return pl.BlockSpec(shape, index_map)


# ---------------------------------------------------------------------------
# Kernels
# ---------------------------------------------------------------------------
def _fused_kernel(xa_ref, xb_ref, wa_ref, wb_ref, wsum_ref, bias_ref, o_ref):
    """Fused 2x2 gather + LayerNorm + projection.

    xa_ref / xb_ref : (tr, W2, 2C) blocks for H-parity 0 / 1 (the DMA already
                      de-interleaved them; channels pack [q=0 | q=1]).
    wa_ref / wb_ref : (2C, cout) gamma-folded, parity-permuted weight rows.
    wsum_ref        : (1, cout)  column sums of the folded weight.
    bias_ref        : (1, cout)  beta @ W^T.
    o_ref           : (tr*W2, cout)
    """
    tr, w2, two_c = xa_ref.shape
    rows = tr * w2
    inv_c4 = 1.0 / float(2 * two_c)

    # W2 % 8 == 0 is guaranteed by the wrapper, so these reshapes are pure
    # vreg relabels on contiguous VMEM buffers (no copies).
    xa = xa_ref[...].reshape(rows, two_c)
    xb = xb_ref[...].reshape(rows, two_c)
    xaf = xa.astype(jnp.float32)
    xbf = xb.astype(jnp.float32)

    # One-pass LayerNorm statistics over the merged 4C channels.
    s1 = (jnp.sum(xaf, axis=-1, keepdims=True)
          + jnp.sum(xbf, axis=-1, keepdims=True))
    s2 = (jnp.sum(xaf * xaf, axis=-1, keepdims=True)
          + jnp.sum(xbf * xbf, axis=-1, keepdims=True))
    mean = s1 * inv_c4
    var = jnp.maximum(s2 * inv_c4 - mean * mean, 0.0)
    inv = jax.lax.rsqrt(var + LN_EPS)

    # Project the raw activations; apply the normalization on the (rows, cout)
    # result:  ((x - mean) * inv) @ W' == inv * (x @ W' - mean * colsum(W')).
    acc = jnp.dot(xa.astype(wa_ref.dtype), wa_ref[...],
                  preferred_element_type=jnp.float32)
    acc = acc + jnp.dot(xb.astype(wb_ref.dtype), wb_ref[...],
                        preferred_element_type=jnp.float32)
    out = (acc - mean * wsum_ref[...]) * inv + bias_ref[...]
    o_ref[...] = out.astype(o_ref.dtype)


def _flat_kernel(x_ref, w_ref, wsum_ref, bias_ref, o_ref):
    """LayerNorm + projection on a pre-gathered (tm, 4C) slab (odd-W2 fallback)."""
    c4 = x_ref.shape[-1]
    x = x_ref[...]
    xf = x.astype(jnp.float32)
    s1 = jnp.sum(xf, axis=-1, keepdims=True)
    s2 = jnp.sum(xf * xf, axis=-1, keepdims=True)
    mean = s1 * (1.0 / float(c4))
    var = jnp.maximum(s2 * (1.0 / float(c4)) - mean * mean, 0.0)
    inv = jax.lax.rsqrt(var + LN_EPS)
    acc = jnp.dot(x.astype(w_ref.dtype), w_ref[...],
                  preferred_element_type=jnp.float32)
    out = (acc - mean * wsum_ref[...]) * inv + bias_ref[...]
    o_ref[...] = out.astype(o_ref.dtype)


# ---------------------------------------------------------------------------
# Parameter folding (hoisted out of the per-call forward; cache per param set)
# ---------------------------------------------------------------------------
def fold_patch_merging_params(gamma, beta, w_reduction):
    """Fold the LayerNorm affine into the projection.

      (normalize(x) * gamma + beta) @ W^T
        == normalize(x) @ (diag(gamma) @ W^T) + beta @ W^T

    Returns a dict of folded operands; call once per parameter set and reuse.
    """
    cout, c4 = w_reduction.shape
    c = c4 // 4
    wt = w_reduction.astype(jnp.float32).T                      # (4C, cout)
    w_prime = gamma.astype(jnp.float32)[:, None] * wt           # (4C, cout)
    bias = (beta.astype(jnp.float32) @ wt).reshape(1, cout)     # (1, cout)
    wsum = jnp.sum(w_prime, axis=0, keepdims=True)              # (1, cout)

    # bf16 matmul operands at real Swin widths (MXU fast path, half the
    # resident-weight VMEM); f32 at small C keeps numerics tight.
    mm_dtype = jnp.bfloat16 if c4 >= 512 else jnp.float32

    # Kernel channel order per parity stream: p=0 carries [x0 | x2] and p=1
    # carries [x1 | x3]; torch order is [x0, x1, x2, x3].  Permute the folded
    # weight rows accordingly (LayerNorm stats are order-invariant).
    wa = jnp.concatenate([w_prime[0:c], w_prime[2 * c:3 * c]], axis=0)
    wb = jnp.concatenate([w_prime[c:2 * c], w_prime[3 * c:4 * c]], axis=0)
    return dict(
        wa=wa.astype(mm_dtype), wb=wb.astype(mm_dtype),
        w_flat=w_prime.astype(mm_dtype),
        wsum=wsum, bias=bias, mm_dtype=mm_dtype, dim=c, cout=cout,
    )


# ---------------------------------------------------------------------------
# Forward paths
# ---------------------------------------------------------------------------
def _fused_path(x, params, B, H2, W2, C, cout, max_rows, min_steps):
    BH2 = B * H2
    N = BH2 * W2
    two_c = 2 * C

    # Free view (no HBM slab): (B, H, W, C) -> (B*H/2, 2, W/2, 2C).
    # dim 1 = H-parity p; the channel dim packs the W-parity [q=0 | q=1].
    x4 = x.reshape(BH2, 2, W2, two_c)

    wa, wb = params["wa"], params["wb"]
    wsum, bias = params["wsum"], params["bias"]
    x_bytes = jnp.dtype(x.dtype).itemsize
    w_bytes = jnp.dtype(params["mm_dtype"]).itemsize

    vmem_cap = _vmem_capacity_bytes()
    budget = _vmem_budget(vmem_cap)
    in_bufs = 3 if vmem_cap >= (96 << 20) else 2   # deeper input buffering on v5e/v6e

    # Working-set estimate, per merged-H-row (tr unit) and for constants.
    consts = 2 * two_c * cout * w_bytes + 2 * cout * 4
    per_tr = (in_bufs * 2 * W2 * two_c * x_bytes       # two parity input blocks
              + 2 * W2 * cout * x_bytes                # output block (double buffered)
              + W2 * (2 * two_c * (4 + w_bytes)        # f32 stats copies + mm casts
                      + cout * 4 + 64))                # f32 accumulator + stats
    tr_budget = max(1, (budget - 2 * consts) // per_tr)

    tr = max(1, min(BH2, max(1, max_rows // W2), tr_budget))
    if min_steps > 1 and BH2 >= min_steps:
        tr = max(1, min(tr, BH2 // min_steps))         # guarantee >= min_steps steps
    grid = (pl.cdiv(BH2, tr),)                          # edge block masked, no divisor req.
    rows = tr * W2
    est = per_tr * tr + 2 * consts
    vmem_limit = _vmem_limit(vmem_cap, est)

    def call(enhanced_buffering):
        x_kwargs = {}
        if enhanced_buffering and in_bufs != 2:
            x_kwargs = dict(pipeline_mode=pl.Buffered(in_bufs))
        in_specs = [
            pl.BlockSpec((tr, None, W2, two_c), lambda i: (i, 0, 0, 0), **x_kwargs),
            pl.BlockSpec((tr, None, W2, two_c), lambda i: (i, 1, 0, 0), **x_kwargs),
            _const_spec((two_c, cout), enhanced_buffering),
            _const_spec((two_c, cout), enhanced_buffering),
            _const_spec((1, cout), enhanced_buffering),
            _const_spec((1, cout), enhanced_buffering),
        ]
        return pl.pallas_call(
            _fused_kernel,
            out_shape=jax.ShapeDtypeStruct((N, cout), x.dtype),
            grid=grid,
            in_specs=in_specs,
            out_specs=pl.BlockSpec((rows, cout), lambda i: (i, 0)),
            compiler_params=pltpu.CompilerParams(
                dimension_semantics=("parallel",),
                vmem_limit_bytes=vmem_limit,
            ),
            cost_estimate=pl.CostEstimate(
                flops=2 * N * 4 * C * cout,
                transcendentals=N,
                bytes_accessed=(N * 4 * C * x_bytes + N * cout * x_bytes
                                + 2 * two_c * cout * w_bytes),
            ),
        )(x4, x4, wa, wb, wsum, bias)

    try:
        return call(True)
    except Exception:
        # pipeline_mode / pl.Buffered not supported on this jax version:
        # fall back to default (double) buffering everywhere.
        return call(False)


def _gathered_path(x, params, B, H2, W2, C, cout, max_rows, min_steps):
    # TODO(synk): odd W/2 still stages the merged (N, 4C) slab in HBM (one
    # extra activation write+read) because Mosaic cannot freely collapse a
    # non-8-aligned sublane dim; acceptable for the small spatial sizes where
    # this triggers (e.g. 14x14 -> 7x7), but a relayout-free path would be nicer.
    N = B * H2 * W2
    c4 = 4 * C
    x0 = x[:, 0::2, 0::2, :]
    x1 = x[:, 1::2, 0::2, :]
    x2 = x[:, 0::2, 1::2, :]
    x3 = x[:, 1::2, 1::2, :]
    xm = jnp.concatenate([x0, x1, x2, x3], axis=-1).reshape(N, c4)

    w = params["w_flat"]
    wsum, bias = params["wsum"], params["bias"]
    x_bytes = jnp.dtype(x.dtype).itemsize
    w_bytes = jnp.dtype(params["mm_dtype"]).itemsize

    vmem_cap = _vmem_capacity_bytes()
    budget = _vmem_budget(vmem_cap)

    consts = c4 * cout * w_bytes + 2 * cout * 4
    per_row = (2 * c4 * x_bytes + 2 * cout * x_bytes
               + c4 * (4 + w_bytes) + cout * 4 + 64)
    tm_budget = max(8, (budget - 2 * consts) // per_row)

    tm = min(max_rows, tm_budget)
    if N >= 8 * min_steps:
        tm = min(tm, N // min_steps)
    if N >= 8:
        tm = max(8, min((tm // 8) * 8, (N // 8) * 8))
    else:
        tm = N
    grid = (pl.cdiv(N, tm),)
    est = per_row * tm + 2 * consts
    vmem_limit = _vmem_limit(vmem_cap, est)

    def call(single_buffer_consts):
        return pl.pallas_call(
            _flat_kernel,
            out_shape=jax.ShapeDtypeStruct((N, cout), x.dtype),
            grid=grid,
            in_specs=[
                pl.BlockSpec((tm, c4), lambda i: (i, 0)),
                _const_spec((c4, cout), single_buffer_consts),
                _const_spec((1, cout), single_buffer_consts),
                _const_spec((1, cout), single_buffer_consts),
            ],
            out_specs=pl.BlockSpec((tm, cout), lambda i: (i, 0)),
            compiler_params=pltpu.CompilerParams(
                dimension_semantics=("parallel",),
                vmem_limit_bytes=vmem_limit,
            ),
            cost_estimate=pl.CostEstimate(
                flops=2 * N * c4 * cout,
                transcendentals=N,
                bytes_accessed=(N * c4 * x_bytes + N * cout * x_bytes
                                + c4 * cout * w_bytes),
            ),
        )(xm, w, wsum, bias)

    try:
        return call(True)
    except Exception:
        return call(False)


def patch_merging_forward(x, gamma=None, beta=None, w_reduction=None, *,
                          params=None,
                          max_rows_per_step=_ROWS_PER_STEP_TARGET,
                          min_grid_steps=_MIN_GRID_STEPS):
    """Swin PatchMerging forward.  x: (B, H, W, C) -> (B, H/2, W/2, 2C)."""
    B, H, W, C = x.shape
    assert H % 2 == 0 and W % 2 == 0, "H and W must be even"
    if params is None:
        params = fold_patch_merging_params(gamma, beta, w_reduction)
    assert params["dim"] == C, "folded params built for a different channel count"
    H2, W2 = H // 2, W // 2
    cout = params["cout"]

    if W2 % 8 == 0:
        out = _fused_path(x, params, B, H2, W2, C, cout,
                          max_rows_per_step, min_grid_steps)
    else:
        out = _gathered_path(x, params, B, H2, W2, C, cout,
                             max_rows_per_step, min_grid_steps)
    return out.reshape(B, H2, W2, cout)


# ---------------------------------------------------------------------------
# Plain-JAX reference (matches the PyTorch module)
# ---------------------------------------------------------------------------
def _reference(x, gamma, beta, w_reduction):
    B, H, W, C = x.shape
    x0 = x[:, 0::2, 0::2, :]
    x1 = x[:, 1::2, 0::2, :]
    x2 = x[:, 0::2, 1::2, :]
    x3 = x[:, 1::2, 1::2, :]
    xm = jnp.concatenate([x0, x1, x2, x3], axis=-1).reshape(B, -1, 4 * C)
    mean = jnp.mean(xm, axis=-1, keepdims=True)
    var = jnp.mean((xm - mean) ** 2, axis=-1, keepdims=True)
    xn = (xm - mean) / jnp.sqrt(var + LN_EPS)
    y = xn * gamma + beta
    y = y @ w_reduction.T
    return y.reshape(B, H // 2, W // 2, 2 * C)


def _run_case(B, H, W, C, *, atol=5e-4, rtol=5e-4, **kwargs):
    key = jax.random.PRNGKey(0)
    kx, kw, kg, kb = jax.random.split(key, 4)
    x = jax.random.normal(kx, (B, H, W, C), dtype=jnp.float32)
    # nn.Linear(4*dim, 2*dim, bias=False): weight shape (2C, 4C)
    w_red = jax.random.normal(kw, (2 * C, 4 * C), dtype=jnp.float32) * 0.05
    gamma = 1.0 + 0.1 * jax.random.normal(kg, (4 * C,), dtype=jnp.float32)
    beta = 0.1 * jax.random.normal(kb, (4 * C,), dtype=jnp.float32)

    # Fold the LayerNorm affine into the projection once (cacheable per
    # parameter set) and reuse the folded operands for the forward call.
    params = fold_patch_merging_params(gamma, beta, w_red)
    out = patch_merging_forward(x, gamma, beta, w_red, params=params, **kwargs)
    out = jax.block_until_ready(out)

    ref = _reference(x, gamma, beta, w_red)
    assert out.shape == (B, H // 2, W // 2, 2 * C), out.shape
    err = float(jnp.max(jnp.abs(out - ref)))
    assert jnp.allclose(out, ref, atol=atol, rtol=rtol), (
        f"mismatch vs reference for shape {(B, H, W, C)}: max abs err {err}")


if __name__ == "__main__":
    # Fused path, f32 matmul, multi-step pipelined grid (BH2=16 -> 8 steps).
    _run_case(2, 16, 16, 32)
    # Fused path with a partial last block (BH2=15, tr=2 -> cdiv grid of 8).
    _run_case(3, 10, 16, 32, max_rows_per_step=16, min_grid_steps=1)
    # Fused path, bf16 MXU operands (4C = 512): validates the production path.
    _run_case(2, 8, 16, 128, atol=4e-2, rtol=4e-2)
    # W/2 not a multiple of 8 -> improved pre-gathered fallback path.
    _run_case(2, 12, 12, 32)
    print("KERNEL_OK")
</pallas_src>

<mosaic_0001>
module attributes {stable_mosaic.version = 11 : i64} {
  func.func @_fused_kernel(%arg0: i32, %arg1: memref<2x1x8x64xf32, #tpu.memory_space<vmem>>, %arg2: memref<2x1x8x64xf32, #tpu.memory_space<vmem>>, %arg3: memref<64x64xf32, #tpu.memory_space<vmem>>, %arg4: memref<64x64xf32, #tpu.memory_space<vmem>>, %arg5: memref<1x64xf32, #tpu.memory_space<vmem>>, %arg6: memref<1x64xf32, #tpu.memory_space<vmem>>, %arg7: memref<16x64xf32, #tpu.memory_space<vmem>>) attributes {dimension_semantics = [#tpu.dimension_semantics<parallel>], iteration_bounds = array<i64: 8>, scalar_prefetch = 0 : i64, scratch_operands = 0 : i64, tpu.core_type = #tpu.core_type<tc>, window_params = [{transform_indices = @transform_0, window_bounds = array<i64: 2, 1, 8, 64>}, {transform_indices = @transform_1, window_bounds = array<i64: 2, 1, 8, 64>}, {pipeline_mode = #tpu.pipeline_mode<synchronous>, transform_indices = @transform_2, window_bounds = array<i64: 64, 64>}, {pipeline_mode = #tpu.pipeline_mode<synchronous>, transform_indices = @transform_3, window_bounds = array<i64: 64, 64>}, {pipeline_mode = #tpu.pipeline_mode<synchronous>, transform_indices = @transform_4, window_bounds = array<i64: 1, 64>}, {pipeline_mode = #tpu.pipeline_mode<synchronous>, transform_indices = @transform_5, window_bounds = array<i64: 1, 64>}, {transform_indices = @transform_6, window_bounds = array<i64: 16, 64>}]} {
    %c0 = arith.constant 0 : index
    %c0_0 = arith.constant 0 : index
    %c0_1 = arith.constant 0 : index
    %c0_2 = arith.constant 0 : index
    %0 = vector.load %arg1[%c0, %c0_0, %c0_1, %c0_2] : memref<2x1x8x64xf32, #tpu.memory_space<vmem>>, vector<2x1x8x64xf32>
    %1 = vector.shape_cast %0 : vector<2x1x8x64xf32> to vector<2x8x64xf32>
    %2 = vector.shape_cast %1 : vector<2x8x64xf32> to vector<16x64xf32>
    %c0_3 = arith.constant 0 : index
    %c0_4 = arith.constant 0 : index
    %c0_5 = arith.constant 0 : index
    %c0_6 = arith.constant 0 : index
    %3 = vector.load %arg2[%c0_3, %c0_4, %c0_5, %c0_6] : memref<2x1x8x64xf32, #tpu.memory_space<vmem>>, vector<2x1x8x64xf32>
    %4 = vector.shape_cast %3 : vector<2x1x8x64xf32> to vector<2x8x64xf32>
    %5 = vector.shape_cast %4 : vector<2x8x64xf32> to vector<16x64xf32>
    %cst = arith.constant dense<0.000000e+00> : vector<16xf32>
    %6 = vector.multi_reduction <add>, %2, %cst [1] : vector<16x64xf32> to vector<16xf32>
    %7 = vector.shape_cast %6 : vector<16xf32> to vector<16x1xf32>
    %cst_7 = arith.constant dense<0.000000e+00> : vector<16xf32>
    %8 = vector.multi_reduction <add>, %5, %cst_7 [1] : vector<16x64xf32> to vector<16xf32>
    %9 = vector.shape_cast %8 : vector<16xf32> to vector<16x1xf32>
    %10 = arith.addf %7, %9 : vector<16x1xf32>
    %11 = arith.mulf %2, %2 : vector<16x64xf32>
    %cst_8 = arith.constant dense<0.000000e+00> : vector<16xf32>
    %12 = vector.multi_reduction <add>, %11, %cst_8 [1] : vector<16x64xf32> to vector<16xf32>
    %13 = vector.shape_cast %12 : vector<16xf32> to vector<16x1xf32>
    %14 = arith.mulf %5, %5 : vector<16x64xf32>
    %cst_9 = arith.constant dense<0.000000e+00> : vector<16xf32>
    %15 = vector.multi_reduction <add>, %14, %cst_9 [1] : vector<16x64xf32> to vector<16xf32>
    %16 = vector.shape_cast %15 : vector<16xf32> to vector<16x1xf32>
    %17 = arith.addf %13, %16 : vector<16x1xf32>
    %cst_10 = arith.constant 7.812500e-03 : f32
    %18 = vector.broadcast %cst_10 : f32 to vector<16x1xf32>
    %19 = arith.mulf %10, %18 : vector<16x1xf32>
    %cst_11 = arith.constant 7.812500e-03 : f32
    %20 = vector.broadcast %cst_11 : f32 to vector<16x1xf32>
    %21 = arith.mulf %17, %20 : vector<16x1xf32>
    %22 = arith.mulf %19, %19 : vector<16x1xf32>
    %23 = arith.subf %21, %22 : vector<16x1xf32>
    %cst_12 = arith.constant 0.000000e+00 : f32
    %24 = vector.broadcast %cst_12 : f32 to vector<16x1xf32>
    %25 = arith.maximumf %23, %24 : vector<16x1xf32>
    %cst_13 = arith.constant 9.99999974E-6 : f32
    %26 = vector.broadcast %cst_13 : f32 to vector<16x1xf32>
    %27 = arith.addf %25, %26 : vector<16x1xf32>
    %28 = math.rsqrt %27 : vector<16x1xf32>
    %c0_14 = arith.constant 0 : index
    %c0_15 = arith.constant 0 : index
    %29 = vector.load %arg3[%c0_14, %c0_15] : memref<64x64xf32, #tpu.memory_space<vmem>>, vector<64x64xf32>
    %cst_16 = arith.constant dense<0.000000e+00> : vector<16x64xf32>
    %30 = tpu.matmul %2, %29, %cst_16 {dimension_numbers = #tpu.dot_dimension_numbers<[1], [0], [0], [1], [0, 0, 1, 1], [], []>} : vector<16x64xf32>, vector<64x64xf32>, vector<16x64xf32> -> vector<16x64xf32>
    %c0_17 = arith.constant 0 : index
    %c0_18 = arith.constant 0 : index
    %31 = vector.load %arg4[%c0_17, %c0_18] : memref<64x64xf32, #tpu.memory_space<vmem>>, vector<64x64xf32>
    %cst_19 = arith.constant dense<0.000000e+00> : vector<16x64xf32>
    %32 = tpu.matmul %5, %31, %cst_19 {dimension_numbers = #tpu.dot_dimension_numbers<[1], [0], [0], [1], [0, 0, 1, 1], [], []>} : vector<16x64xf32>, vector<64x64xf32>, vector<16x64xf32> -> vector<16x64xf32>
    %33 = arith.addf %30, %32 : vector<16x64xf32>
    %c0_20 = arith.constant 0 : index
    %c0_21 = arith.constant 0 : index
    %34 = vector.load %arg5[%c0_20, %c0_21] : memref<1x64xf32, #tpu.memory_space<vmem>>, vector<1x64xf32>
    %35 = vector.broadcast %19 : vector<16x1xf32> to vector<16x64xf32>
    %36 = vector.broadcast %34 : vector<1x64xf32> to vector<16x64xf32>
    %37 = arith.mulf %35, %36 : vector<16x64xf32>
    %38 = arith.subf %33, %37 : vector<16x64xf32>
    %39 = vector.broadcast %28 : vector<16x1xf32> to vector<16x64xf32>
    %40 = arith.mulf %38, %39 : vector<16x64xf32>
    %c0_22 = arith.constant 0 : index
    %c0_23 = arith.constant 0 : index
    %41 = vector.load %arg6[%c0_22, %c0_23] : memref<1x64xf32, #tpu.memory_space<vmem>>, vector<1x64xf32>
    %42 = vector.broadcast %41 : vector<1x64xf32> to vector<16x64xf32>
    %43 = arith.addf %40, %42 : vector<16x64xf32>
    %c0_24 = arith.constant 0 : index
    %c0_25 = arith.constant 0 : index
    %44 = vector.load %arg7[%c0_24, %c0_25] : memref<16x64xf32, #tpu.memory_space<vmem>>, vector<16x64xf32>
    tpu.vector_store %arg7[%c0_24, %c0_25], %43 {strides = array<i32>} : memref<16x64xf32, #tpu.memory_space<vmem>>, vector<16x64xf32>,
    return
  }
  func.func @transform_0(%arg0: i32) -> (i32, i32, i32, i32) {
    %c0_i32 = arith.constant 0 : i32
    %c0_i32_0 = arith.constant 0 : i32
    %c0_i32_1 = arith.constant 0 : i32
    %c0_i32_2 = arith.constant 0 : i32
    return %arg0, %c0_i32, %c0_i32_0, %c0_i32_1 : i32, i32, i32, i32
  }
  func.func @transform_1(%arg0: i32) -> (i32, i32, i32, i32) {
    %c1_i32 = arith.constant 1 : i32
    %c0_i32 = arith.constant 0 : i32
    %c0_i32_0 = arith.constant 0 : i32
    %c0_i32_1 = arith.constant 0 : i32
    return %arg0, %c1_i32, %c0_i32, %c0_i32_0 : i32, i32, i32, i32
  }
  func.func @transform_2(%arg0: i32) -> (i32, i32) {
    %c0_i32 = arith.constant 0 : i32
    %c0_i32_0 = arith.constant 0 : i32
    %c0_i32_1 = arith.constant 0 : i32
    return %c0_i32, %c0_i32_0 : i32, i32
  }
  func.func @transform_3(%arg0: i32) -> (i32, i32) {
    %c0_i32 = arith.constant 0 : i32
    %c0_i32_0 = arith.constant 0 : i32
    %c0_i32_1 = arith.constant 0 : i32
    return %c0_i32, %c0_i32_0 : i32, i32
  }
  func.func @transform_4(%arg0: i32) -> (i32, i32) {
    %c0_i32 = arith.constant 0 : i32
    %c0_i32_0 = arith.constant 0 : i32
    %c0_i32_1 = arith.constant 0 : i32
    return %c0_i32, %c0_i32_0 : i32, i32
  }
  func.func @transform_5(%arg0: i32) -> (i32, i32) {
    %c0_i32 = arith.constant 0 : i32
    %c0_i32_0 = arith.constant 0 : i32
    %c0_i32_1 = arith.constant 0 : i32
    return %c0_i32, %c0_i32_0 : i32, i32
  }
  func.func @transform_6(%arg0: i32) -> (i32, i32) {
    %c0_i32 = arith.constant 0 : i32
    %c0_i32_0 = arith.constant 0 : i32
    return %arg0, %c0_i32 : i32, i32
  }
}

</mosaic_0001>

<llo_original>
// kernel: tpu_custom_call.1
$region0: #{tpu_custom_call.1}
  #allocation0 [shape = 'u32[]', space=smem, size = 0x4, offset = 0x4, fixed_abs, tag = 'smem constant byte address 0x4 - core index']
  #allocation1 [shape = 'u32[144,128]{1,0:T(1,128)}', space=vmem, size = 0x12000, scoped, tag = 'internal scratch']
  %s0 = inlined_call_operand.hbm [shape: f32[16,2,8,64], index: 0, kind: input, shape index: {}]
  %s1 = inlined_call_operand.hbm [shape: f32[16,2,8,64], index: 1, kind: input, shape index: {}]
  %s2 = inlined_call_operand.hbm [shape: f32[64,64], index: 2, kind: input, shape index: {}]
  %s3 = inlined_call_operand.hbm [shape: f32[64,64], index: 3, kind: input, shape index: {}]
  %s4 = inlined_call_operand.vmem [shape: f32[1,64], index: 4, kind: input, shape index: {}]
  %s5 = inlined_call_operand.vmem [shape: f32[1,64], index: 5, kind: input, shape index: {}]
  %s6 = inlined_call_operand.vmem [shape: f32[128,64], index: 6, kind: output, shape index: {}]
  %s7 = sld [smem:[#allocation0]]
  $region73: #{tpu_custom_call.1} parent=0
    _
  %s9 = ssub.s32 1, %s7
  %s10 = scalar_select 0, %s9, %s7
  $region1: #{tpu_custom_call.1} parent=0
    #allocation2 [shape = 'u8[16384]{0}', space=vmem, size = 0x4000, scoped, tag = 'input window, operand 0']
    #allocation3 [shape = 's32[2]{0}', space=sflag, size = 0x8, scoped, tag = 'scoped memory for tpu_custom_call.1']
    #allocation4 [shape = 'u8[16384]{0}', space=vmem, size = 0x4000, scoped, tag = 'input window, operand 1']
    #allocation5 [shape = 's32[2]{0}', space=sflag, size = 0x8, scoped, tag = 'scoped memory for tpu_custom_call.1']
    #allocation6 [shape = 'u8[32768]{0}', space=vmem, size = 0x8000, scoped, tag = 'input window, operand 2, single buffered']
    #allocation7 [shape = 'u8[32768]{0}', space=vmem, size = 0x8000, scoped, tag = 'input window, operand 3, single buffered']
    #allocation8 [shape = 's32[1]{0}', space=sflag, size = 0x4, scoped, tag = 'scoped memory for tpu_custom_call.1']
    %11 = vsyncpa [#allocation3], 0
    %s12 = scalar_lea.sflag [#allocation3], 1
    %13 = vsyncpa %s12, 0
    %14 = vsyncpa [#allocation5], 0
    %s15 = scalar_lea.sflag [#allocation5], 1
    %16 = vsyncpa %s15, 0
    %17 = vsyncpa [#allocation8], 0
    loop: start=0, step=1, limit=10
    $region2: #{tpu_custom_call.1} parent=1 // loop_pre_header
      _
    $region3: #{tpu_custom_call.1} parent=1 // loop_header
      %s19 = sphi 0, %s23
      %p20 = scmp.ge.s32.totalorder %s19, 10
      %s29 = sphi 0, %s31
      %s32 = sphi 0, %s29
      %s33 = sphi 0, %s32
      %s49 = sphi 0, %s33
      %s55 = sphi 0, %s57
      %s58 = sphi 0, %s55
      %s59 = sphi 0, %s58
      %s75 = sphi 0, %s59
      %s79 = sphi 0, %s79
      %s81 = sphi 0, %s79
      %s82 = sphi 0, %s81
      %s96 = sphi 0, %s82
      %s100 = sphi 0, %s100
      %s102 = sphi 0, %s100
      %s103 = sphi 0, %s102
      %s117 = sphi 0, %s103
      %s121 = sphi 0, %s121
      %s123 = sphi 0, %s121
      %s124 = sphi 0, %s123
      %s138 = sphi 0, %s124
      %s142 = sphi 0, %s142
      %s144 = sphi 0, %s142
      %s145 = sphi 0, %s144
      %s159 = sphi 0, %s145
      %s165 = sphi 0, %s167
      %s168 = sphi 0, %s165
      %s169 = sphi 0, %s168
      %s185 = sphi 0, %s169
    $region4: #{tpu_custom_call.1} parent=1 // loop_header_branch
      %22 = sbr.rel (%p20) target = $region8
    $region5: #{tpu_custom_call.1} parent=1 // loop_body
      %s24 = ssub.s32 %s19, 1
      %s25 = ssub.s32 %s19, 2
      %s26 = sadd.s32 %s19, 1
      %s27 = ssub.s32 %s19, %s26
      %p28 = scmp.eq.s32.totalorder %s27, 0
      %s30 = sadd.s32 %s29, 1
      %s31 = scalar_select %p28, %s29, %s30
      %p34 = pneg %p28
      %p35 = scmp.eq.s32.totalorder %s19, 7
      %p36 = por %p34, %p35
      %p37 = scmp.ne.s32.totalorder %s29, %s32
      %p38 = scmp.eq.s32.totalorder %s19, 0
      %p39 = por %p37, %p38
      %p40 = scmp.ne.s32.totalorder %s29, %s32
      %p41 = scmp.eq.s32.totalorder %s24, 7
      %p42 = por %p40, %p41
      %p43 = scmp.ne.s32.totalorder %s32, %s33
      %p44 = scmp.eq.s32.totalorder %s24, 0
      %p45 = por %p43, %p44
      %p46 = scmp.ne.s32.totalorder %s32, %s33
      %p47 = scmp.eq.s32.totalorder %s25, 7
      %p48 = por %p46, %p47
      %p50 = scmp.ne.s32.totalorder %s33, %s49
      %p51 = scmp.eq.s32.totalorder %s25, 0
      %p52 = por %p50, %p51
      %s53 = ssub.s32 %s19, %s26
      %p54 = scmp.eq.s32.totalorder %s53, 0
      %s56 = sadd.s32 %s55, 1
      %s57 = scalar_select %p54, %s55, %s56
      %p60 = pneg %p54
      %p61 = scmp.eq.s32.totalorder %s19, 7
      %p62 = por %p60, %p61
      %p63 = scmp.ne.s32.totalorder %s55, %s58
      %p64 = scmp.eq.s32.totalorder %s19, 0
      %p65 = por %p63, %p64
      %p66 = scmp.ne.s32.totalorder %s55, %s58
      %p67 = scmp.eq.s32.totalorder %s24, 7
      %p68 = por %p66, %p67
      %p69 = scmp.ne.s32.totalorder %s58, %s59
      %p70 = scmp.eq.s32.totalorder %s24, 0
      %p71 = por %p69, %p70
      %p72 = scmp.ne.s32.totalorder %s58, %s59
      %p73 = scmp.eq.s32.totalorder %s25, 7
      %p74 = por %p72, %p73
      %p76 = scmp.ne.s32.totalorder %s59, %s75
      %p77 = scmp.eq.s32.totalorder %s25, 0
      %p78 = por %p76, %p77
      %s80 = sadd.s32 %s79, 1
      %p83 = scmp.eq.s32.totalorder %s19, 7
      %p84 = scmp.ne.s32.totalorder %s79, %s81
      %p85 = scmp.eq.s32.totalorder %s19, 0
      %p86 = por %p84, %p85
      %p87 = scmp.ne.s32.totalorder %s79, %s81
      %p88 = scmp.eq.s32.totalorder %s24, 7
      %p89 = por %p87, %p88
      %p90 = scmp.ne.s32.totalorder %s81, %s82
      %p91 = scmp.eq.s32.totalorder %s24, 0
      %p92 = por %p90, %p91
      %p93 = scmp.ne.s32.totalorder %s81, %s82
      %p94 = scmp.eq.s32.totalorder %s25, 7
      %p95 = por %p93, %p94
      %p97 = scmp.ne.s32.totalorder %s82, %s96
      %p98 = scmp.eq.s32.totalorder %s25, 0
      %p99 = por %p97, %p98
      %s101 = sadd.s32 %s100, 1
      %p104 = scmp.eq.s32.totalorder %s19, 7
      %p105 = scmp.ne.s32.totalorder %s100, %s102
      %p106 = scmp.eq.s32.totalorder %s19, 0
      %p107 = por %p105, %p106
      %p108 = scmp.ne.s32.totalorder %s100, %s102
      %p109 = scmp.eq.s32.totalorder %s24, 7
      %p110 = por %p108, %p109
      %p111 = scmp.ne.s32.totalorder %s102, %s103
      %p112 = scmp.eq.s32.totalorder %s24, 0
      %p113 = por %p111, %p112
      %p114 = scmp.ne.s32.totalorder %s102, %s103
      %p115 = scmp.eq.s32.totalorder %s25, 7
      %p116 = por %p114, %p115
      %p118 = scmp.ne.s32.totalorder %s103, %s117
      %p119 = scmp.eq.s32.totalorder %s25, 0
      %p120 = por %p118, %p119
      %s122 = sadd.s32 %s121, 1
      %p125 = scmp.eq.s32.totalorder %s19, 7
      %p126 = scmp.ne.s32.totalorder %s121, %s123
      %p127 = scmp.eq.s32.totalorder %s19, 0
      %p128 = por %p126, %p127
      %p129 = scmp.ne.s32.totalorder %s121, %s123
      %p130 = scmp.eq.s32.totalorder %s24, 7
      %p131 = por %p129, %p130
      %p132 = scmp.ne.s32.totalorder %s123, %s124
      %p133 = scmp.eq.s32.totalorder %s24, 0
      %p134 = por %p132, %p133
      %p135 = scmp.ne.s32.totalorder %s123, %s124
      %p136 = scmp.eq.s32.totalorder %s25, 7
      %p137 = por %p135, %p136
      %p139 = scmp.ne.s32.totalorder %s124, %s138
      %p140 = scmp.eq.s32.totalorder %s25, 0
      %p141 = por %p139, %p140
      %s143 = sadd.s32 %s142, 1
      %p146 = scmp.eq.s32.totalorder %s19, 7
      %p147 = scmp.ne.s32.totalorder %s142, %s144
      %p148 = scmp.eq.s32.totalorder %s19, 0
      %p149 = por %p147, %p148
      %p150 = scmp.ne.s32.totalorder %s142, %s144
      %p151 = scmp.eq.s32.totalorder %s24, 7
      %p152 = por %p150, %p151
      %p153 = scmp.ne.s32.totalorder %s144, %s145
      %p154 = scmp.eq.s32.totalorder %s24, 0
      %p155 = por %p153, %p154
      %p156 = scmp.ne.s32.totalorder %s144, %s145
      %p157 = scmp.eq.s32.totalorder %s25, 7
      %p158 = por %p156, %p157
      %p160 = scmp.ne.s32.totalorder %s145, %s159
      %p161 = scmp.eq.s32.totalorder %s25, 0
      %p162 = por %p160, %p161
      %s163 = ssub.s32 %s19, %s26
      %p164 = scmp.eq.s32.totalorder %s163, 0
      %s166 = sadd.s32 %s165, 1
      %s167 = scalar_select %p164, %s165, %s166
      %p170 = pneg %p164
      %p171 = scmp.eq.s32.totalorder %s19, 7
      %p172 = por %p170, %p171
      %p173 = scmp.ne.s32.totalorder %s165, %s168
      %p174 = scmp.eq.s32.totalorder %s19, 0
      %p175 = por %p173, %p174
      %p176 = scmp.ne.s32.totalorder %s165, %s168
      %p177 = scmp.eq.s32.totalorder %s24, 7
      %p178 = por %p176, %p177
      %p179 = scmp.ne.s32.totalorder %s168, %s169
      %p180 = scmp.eq.s32.totalorder %s24, 0
      %p181 = por %p179, %p180
      %p182 = scmp.ne.s32.totalorder %s168, %s169
      %p183 = scmp.eq.s32.totalorder %s25, 7
      %p184 = por %p182, %p183
      %p186 = scmp.ne.s32.totalorder %s169, %s185
      %p187 = scmp.eq.s32.totalorder %s25, 0
      %p188 = por %p186, %p187
      %p189 = scmp.le.s32.totalorder 1, %s19
      %p190 = scmp.lt.s32.totalorder %s19, 9
      %p191 = pnand %p189, %p190
      %p192 = pneg %p191
      // Predicated region
      $region9: #{tpu_custom_call.1} parent=5 // pred_check
        _
      $region10: #{tpu_custom_call.1} parent=5 // pred_check_branch
        %194 = sbr.rel (%p191) target = $region12
      $region11: #{tpu_custom_call.1} parent=5 // pred_region
        %s195 = ssub.s32 %s19, 1
        // Predicated region
        $region13: #{tpu_custom_call.1} parent=11 // pred_check
          %p196 = pneg %p92
        $region14: #{tpu_custom_call.1} parent=11 // pred_check_branch
          %198 = sbr.rel (%p196) target = $region16
        $region15: #{tpu_custom_call.1} parent=11 // pred_region
          %s200 = ssub.s32 1024, 1024
          %201 = vsyncadd [#allocation5], %s200
          %s202 = sshll.u32 [#allocation6], 4
          %s203 = int_to_ptr.vmem [resolvable:$true] %s202
          %208 = dma.hbm_to_vmem [thread:$0]  %s2, 1024, %s203, [#allocation5], 128, 128, 8
        $region16: #{tpu_custom_call.1} parent=11 // pred_fallthru
          _
        // Predicated region
        $region17: #{tpu_custom_call.1} parent=11 // pred_check
          %p209 = pneg %p113
        $region18: #{tpu_custom_call.1} parent=11 // pred_check_branch
          %211 = sbr.rel (%p209) target = $region20
        $region19: #{tpu_custom_call.1} parent=11 // pred_region
          %s213 = ssub.s32 1024, 1024
          %214 = vsyncadd [#allocation8], %s213
          %s215 = sshll.u32 [#allocation7], 4
          %s216 = int_to_ptr.vmem [resolvable:$true] %s215
          %221 = dma.hbm_to_vmem [thread:$0]  %s3, 1024, %s216, [#allocation8], 128, 128, 8
        $region20: #{tpu_custom_call.1} parent=11 // pred_fallthru
          _
        // Predicated region
        $region21: #{tpu_custom_call.1} parent=11 // pred_check
          %p222 = pneg %p134
        $region22: #{tpu_custom_call.1} parent=11 // pred_check_branch
          %224 = sbr.rel (%p222) target = $region24
        $region23: #{tpu_custom_call.1} parent=11 // pred_region
          _
        $region24: #{tpu_custom_call.1} parent=11 // pred_fallthru
          _
        // Predicated region
        $region25: #{tpu_custom_call.1} parent=11 // pred_check
          %p225 = pneg %p155
        $region26: #{tpu_custom_call.1} parent=11 // pred_check_branch
          %227 = sbr.rel (%p225) target = $region28
        $region27: #{tpu_custom_call.1} parent=11 // pred_region
          _
        $region28: #{tpu_custom_call.1} parent=11 // pred_fallthru
          _
      $region12: #{tpu_custom_call.1} parent=5 // pred_fallthru
        _
      %p228 = scmp.lt.s32.totalorder %s19, 8
      // Predicated region
      $region29: #{tpu_custom_call.1} parent=5 // pred_check
        %p229 = pneg %p228
      $region30: #{tpu_custom_call.1} parent=5 // pred_check_branch
        %231 = sbr.rel (%p229) target = $region32
      $region31: #{tpu_custom_call.1} parent=5 // pred_region
        // Predicated region
        $region33: #{tpu_custom_call.1} parent=31 // pred_check
          %p232 = pneg %p39
        $region34: #{tpu_custom_call.1} parent=31 // pred_check_branch
          %234 = sbr.rel (%p232) target = $region36
        $region35: #{tpu_custom_call.1} parent=31 // pred_region
          %s235 = sand.u32 %s29, 1
          %s236 = scalar_lea.sflag [#allocation3], %s235
          %s237 = sand.u32 %s29, 1
          %s238 = smul.addr %s237, 16
          %s239 = scalar_lea.vmem [#allocation2], %s238
          %s240 = smul.u32 2, %s19
          %s242 = ssub.s32 256, 256
          %243 = vsyncadd %s236, %s242
          %s244 = smul.addr %s240, 2
          %s245 = smul.addr %s244, 128
          %s246 = scalar_lea.hbm %s0, %s245
          %s247 = sshll.u32 %s239, 4
          %s248 = int_to_ptr.vmem [resolvable:$true] %s247
          %253 = dma.hbm_to_vmem [thread:$0]  %s246, 256, %s248, %s236, 256, 128, 8
        $region36: #{tpu_custom_call.1} parent=31 // pred_fallthru
          _
        // Predicated region
        $region37: #{tpu_custom_call.1} parent=31 // pred_check
          %p254 = pneg %p65
        $region38: #{tpu_custom_call.1} parent=31 // pred_check_branch
          %256 = sbr.rel (%p254) target = $region40
        $region39: #{tpu_custom_call.1} parent=31 // pred_region
          %s257 = sand.u32 %s19, 1
          %s258 = scalar_lea.sflag [#allocation5], %s257
          %s259 = sand.u32 %s55, 1
          %s260 = smul.addr %s259, 16
          %s261 = scalar_lea.vmem [#allocation4], %s260
          %s262 = smul.u32 2, %s19
          %s264 = ssub.s32 256, 256
          %265 = vsyncadd %s258, %s264
          %s266 = smul.addr %s262, 2
          %s267 = sadd.s32 1, %s266
          %s268 = smul.addr %s267, 128
          %s269 = scalar_lea.hbm %s1, %s268
          %s270 = sshll.u32 %s261, 4
          %s271 = int_to_ptr.vmem [resolvable:$true] %s270
          %276 = dma.hbm_to_vmem [thread:$0]  %s269, 256, %s271, %s258, 256, 128, 8
        $region40: #{tpu_custom_call.1} parent=31 // pred_fallthru
          _
      $region32: #{tpu_custom_call.1} parent=5 // pred_fallthru
        _
      %p277 = scmp.le.s32.totalorder 1, %s19
      %p278 = scmp.lt.s32.totalorder %s19, 9
      %p279 = pnand %p277, %p278
      %p280 = pneg %p279
      // Predicated region
      $region41: #{tpu_custom_call.1} parent=5 // pred_check
        _
      $region42: #{tpu_custom_call.1} parent=5 // pred_check_branch
        %282 = sbr.rel (%p279) target = $region44
      $region43: #{tpu_custom_call.1} parent=5 // pred_region
        %s283 = ssub.s32 %s19, 1
        %s284 = sand.u32 %s32, 1
        %s285 = scalar_lea.sflag [#allocation3], %s284
        %s286 = sand.u32 %s32, 1
        %s287 = smul.addr %s286, 16
        %s288 = scalar_lea.vmem [#allocation2], %s287
        // Predicated region
        $region45: #{tpu_custom_call.1} parent=43 // pred_check
          %p289 = pneg %p45
        $region46: #{tpu_custom_call.1} parent=43 // pred_check_branch
          %291 = sbr.rel (%p289) target = $region48
        $region47: #{tpu_custom_call.1} parent=43 // pred_region
          %292 = dma.done %s285, 256
        $region48: #{tpu_custom_call.1} parent=43 // pred_fallthru
          _
        %s293 = sand.u32 %s24, 1
        %s294 = scalar_lea.sflag [#allocation5], %s293
        %s295 = sand.u32 %s58, 1
        %s296 = smul.addr %s295, 16
        %s297 = scalar_lea.vmem [#allocation4], %s296
        // Predicated region
        $region49: #{tpu_custom_call.1} parent=43 // pred_check
          %p298 = pneg %p71
        $region50: #{tpu_custom_call.1} parent=43 // pred_check_branch
          %300 = sbr.rel (%p298) target = $region52
        $region51: #{tpu_custom_call.1} parent=43 // pred_region
          %301 = dma.done %s294, 256
        $region52: #{tpu_custom_call.1} parent=43 // pred_fallthru
          _
        // Predicated region
        $region53: #{tpu_custom_call.1} parent=43 // pred_check
          %p302 = pneg %p92
        $region54: #{tpu_custom_call.1} parent=43 // pred_check_branch
          %304 = sbr.rel (%p302) target = $region56
        $region55: #{tpu_custom_call.1} parent=43 // pred_region
          %305 = dma.done [#allocation5], 1024
        $region56: #{tpu_custom_call.1} parent=43 // pred_fallthru
          _
        // Predicated region
        $region57: #{tpu_custom_call.1} parent=43 // pred_check
          %p306 = pneg %p113
        $region58: #{tpu_custom_call.1} parent=43 // pred_check_branch
          %308 = sbr.rel (%p306) target = $region60
        $region59: #{tpu_custom_call.1} parent=43 // pred_region
          %309 = dma.done [#allocation8], 1024
        $region60: #{tpu_custom_call.1} parent=43 // pred_fallthru
          _
        %s310 = sand.u32 %s32, 1
        %s311 = scalar_lea.sflag [#allocation3], %s310
        %s312 = sand.u32 %s32, 1
        %s313 = smul.addr %s312, 16
        %s314 = scalar_lea.vmem [#allocation2], %s313
        %p315 = pneg %p45
        %p316 = pneg %p42
        %s317 = sand.u32 %s24, 1
        %s318 = scalar_lea.sflag [#allocation5], %s317
        %s319 = sand.u32 %s58, 1
        %s320 = smul.addr %s319, 16
        %s321 = scalar_lea.vmem [#allocation4], %s320
        %p322 = pneg %p71
        %p323 = pneg %p68
        %p324 = pneg %p92
        %p325 = pneg %p89
        %p326 = pneg %p113
        %p327 = pneg %p110
        %p328 = pneg %p134
        %p329 = pneg %p131
        %p330 = pneg %p155
        %p331 = pneg %p152
        %p332 = pneg %p181
        %p333 = pneg %p178
        %s334 = smul.u32 2, %s24
        %p335 = scmp.lt.s32.totalorder %s334, 15
        %s336 = scalar_select %p335, %s334, 15
        %s337 = smul.addr %s336, 8
        %s338 = scalar_lea.vmem %s6, %s337
        %s339 = smul.u32 2, %s24
        %s340 = smul.u32 2, %s24
        %s341 = smul.u32 2, %s24
        %p342 = scmp.lt.s32.totalorder %s341, 15
        %s343 = scalar_select %p342, %s341, 15
        %s344 = smul.addr %s343, 8
        %s345 = scalar_lea.vmem %s6, %s344
        %s346 = smul.u32 2, %s24
        %v347 = vld [vmem:[%s288] sm:$0xff]
        %v348 = vld [vmem:[%s288 + $0x8] sm:$0xff]
        %v349 = vld [vmem:[%s297] sm:$0xff]
        %v350 = vld [vmem:[%s297 + $0x8] sm:$0xff]
        %vm351 = vcmask 523264
        %v352 = vsel %vm351, %v347, 0.0
        %353 = vadd.xlane.f32.xlu0 %v352
        %v354 = vpop.xlane.xlu0 %353
        %v355 = vsel %vm351, %v348, 0.0
        %356 = vadd.xlane.f32.xlu0 %v355
        %v357 = vpop.xlane.xlu0 %356
        %v358 = vsel %vm351, %v349, 0.0
        %359 = vadd.xlane.f32.xlu0 %v358
        %v360 = vpop.xlane.xlu0 %359
        %v361 = vsel %vm351, %v350, 0.0
        %362 = vadd.xlane.f32.xlu0 %v361
        %v363 = vpop.xlane.xlu0 %362
        %v364 = vadd.f32 %v354, %v360
        %v365 = vadd.f32 %v357, %v363
        %v366 = vmul.f32 %v347, %v347
        %v367 = vmul.f32 %v348, %v348
        %v368 = vsel %vm351, %v366, 0.0
        %369 = vadd.xlane.f32.xlu0 %v368
        %v370 = vpop.xlane.xlu0 %369
        %v371 = vsel %vm351, %v367, 0.0
        %372 = vadd.xlane.f32.xlu0 %v371
        %v373 = vpop.xlane.xlu0 %372
        %v374 = vmul.f32 %v349, %v349
        %v375 = vmul.f32 %v350, %v350
        %v376 = vsel %vm351, %v374, 0.0
        %377 = vadd.xlane.f32.xlu0 %v376
        %v378 = vpop.xlane.xlu0 %377
        %v379 = vsel %vm351, %v375, 0.0
        %380 = vadd.xlane.f32.xlu0 %v379
        %v381 = vpop.xlane.xlu0 %380
        %v382 = vadd.f32 %v370, %v378
        %v383 = vadd.f32 %v373, %v381
        %v384 = vmul.f32 %v364, 0.0078125
        %v385 = vmul.f32 %v365, 0.0078125
        %v386 = vmul.f32 %v382, 0.0078125
        %v387 = vmul.f32 %v383, 0.0078125
        %v388 = vmul.f32 %v384, %v384
        %v389 = vmul.f32 %v385, %v385
        %v390 = vsub.f32 %v386, %v388
        %v391 = vsub.f32 %v387, %v389
        %v392 = vmax.f32 %v390, 0.0
        %v393 = vmax.f32 %v391, 0.0
        %v394 = vadd.f32 %v392, 1e-05
        %v395 = vadd.f32 %v393, 1e-05
        %v396 = vrsqrt.pop %v394
        %v397 = vrsqrt.pop %v395
        %v398 = vld [vmem:[#allocation6] sm:$0xff]
        %v399 = vld [vmem:[#allocation6 + $0x8] sm:$0xff]
        %v400 = vld [vmem:[#allocation6 + $0x10] sm:$0xff]
        %v401 = vld [vmem:[#allocation6 + $0x18] sm:$0xff]
        %v402 = vld [vmem:[#allocation6 + $0x20] sm:$0xff]
        %v403 = vld [vmem:[#allocation6 + $0x28] sm:$0xff]
        %v404 = vld [vmem:[#allocation6 + $0x30] sm:$0xff]
        %v405 = vld [vmem:[#allocation6 + $0x38] sm:$0xff]
        %v406 = vld [vmem:[#allocation7] sm:$0xff]
        %v407 = vld [vmem:[#allocation7 + $0x8] sm:$0xff]
        %v408 = vld [vmem:[#allocation7 + $0x10] sm:$0xff]
        %v409 = vld [vmem:[#allocation7 + $0x18] sm:$0xff]
        %v410 = vld [vmem:[#allocation7 + $0x20] sm:$0xff]
        %v411 = vld [vmem:[#allocation7 + $0x28] sm:$0xff]
        %v412 = vld [vmem:[#allocation7 + $0x30] sm:$0xff]
        %v413 = vld [vmem:[#allocation7 + $0x38] sm:$0xff]
        %v415 = vsel %vm351, %v349, 0
        %v418 = vsel %vm351, %v350, 0
        %420 = vmatprep.subr.mxu0 0.0
        %421 = vmatpush1.msra.mxu0 0.0
        %422 = vmatprep.subr.mxu0 0.0
        %423 = vmatpush1.msra.mxu0 0.0
        %424 = vmatprep.subr.mxu0 0.0
        %425 = vmatpush1.msra.mxu0 0.0
        %426 = vmatprep.subr.mxu0 0.0
        %427 = vmatpush1.msra.mxu0 0.0
        %428 = vmatprep.subr.mxu0 0.0
        %429 = vmatpush1.msra.mxu0 0.0
        %430 = vmatprep.subr.mxu0 0.0
        %431 = vmatpush1.msra.mxu0 0.0
        %432 = vmatprep.subr.mxu0 0.0
        %433 = vmatpush1.msra.mxu0 0.0
        %434 = vmatprep.subr.mxu0 0.0
        %435 = vmatpush1.msra.mxu0 0.0
        %436 = vmatprep.subr.mxu0 0.0
        %437 = vmatpush1.msra.mxu0 %v413
        %438 = vmatprep.subr.mxu0 0.0
        %439 = vmatpush1.msra.mxu0 %v412
        %440 = vmatprep.subr.mxu0 0.0
        %441 = vmatpush1.msra.mxu0 %v411
        %442 = vmatprep.subr.mxu0 0.0
        %443 = vmatpush1.msra.mxu0 %v410
        %444 = vmatprep.subr.mxu0 0.0
        %445 = vmatpush1.msra.mxu0 %v409
        %446 = vmatprep.subr.mxu0 0.0
        %447 = vmatpush1.msra.mxu0 %v408
        %448 = vmatprep.subr.mxu0 0.0
        %449 = vmatpush1.msra.mxu0 %v407
        %450 = vmatprep.subr.mxu0 0.0
        %451 = vmatpush1.msra.mxu0 %v406
        %452 = vmatprep.subr.mxu0 0.0
        %453 = vmatpush2.msra.mxu0 0.0
        %454 = vmatprep.subr.mxu0 0.0
        %455 = vmatpush2.msra.mxu0 0.0
        %456 = vmatprep.subr.mxu0 0.0
        %457 = vmatpush2.msra.mxu0 0.0
        %458 = vmatprep.subr.mxu0 0.0
        %459 = vmatpush2.msra.mxu0 0.0
        %460 = vmatprep.subr.mxu0 0.0
        %461 = vmatpush2.msra.mxu0 0.0
        %462 = vmatprep.subr.mxu0 0.0
        %463 = vmatpush2.msra.mxu0 0.0
        %464 = vmatprep.subr.mxu0 0.0
        %465 = vmatpush2.msra.mxu0 0.0
        %466 = vmatprep.subr.mxu0 0.0
        %467 = vmatpush2.msra.mxu0 0.0
        %468 = vmatprep.subr.mxu0 0.0
        %469 = vmatpush2.msra.mxu0 0.0
        %470 = vmatprep.subr.mxu0 0.0
        %471 = vmatpush2.msra.mxu0 0.0
        %472 = vmatprep.subr.mxu0 0.0
        %473 = vmatpush2.msra.mxu0 0.0
        %474 = vmatprep.subr.mxu0 0.0
        %475 = vmatpush2.msra.mxu0 0.0
        %476 = vmatprep.subr.mxu0 0.0
        %477 = vmatpush2.msra.mxu0 0.0
        %478 = vmatprep.subr.mxu0 0.0
        %479 = vmatpush2.msra.mxu0 0.0
        %480 = vmatprep.subr.mxu0 0.0
        %481 = vmatpush2.msra.mxu0 0.0
        %482 = vmatprep.subr.mxu0 0.0
        %483 = vmatpush2.msra.mxu0 0.0
        %484 = vmatprep.mubr.f32.mxu0 0.0
        %485 = vmatmul.mubr.f32.gmra.mxu0 %v415
        %v486 = vpop.f32.mrf.mxu0
        %v487 = vadd.f32 0.0, %v486
        %v488 = vpop.f32.mrf.mxu0
        %489 = vmatprep.mubr.f32.mxu0 0.0
        %490 = vmatmul.mubr.f32.gmra.mxu0 %v418
        %v491 = vpop.f32.mrf.mxu0
        %v492 = vadd.f32 0.0, %v491
        %v493 = vpop.f32.mrf.mxu0
        %494 = vdwg.mxu0
        %v496 = vsel %vm351, %v347, 0
        %v499 = vsel %vm351, %v348, 0
        %501 = vmatprep.subr.mxu0 0.0
        %502 = vmatpush1.msra.mxu0 0.0
        %503 = vmatprep.subr.mxu0 0.0
        %504 = vmatpush1.msra.mxu0 0.0
        %505 = vmatprep.subr.mxu0 0.0
        %506 = vmatpush1.msra.mxu0 0.0
        %507 = vmatprep.subr.mxu0 0.0
        %508 = vmatpush1.msra.mxu0 0.0
        %509 = vmatprep.subr.mxu0 0.0
        %510 = vmatpush1.msra.mxu0 0.0
        %511 = vmatprep.subr.mxu0 0.0
        %512 = vmatpush1.msra.mxu0 0.0
        %513 = vmatprep.subr.mxu0 0.0
        %514 = vmatpush1.msra.mxu0 0.0
        %515 = vmatprep.subr.mxu0 0.0
        %516 = vmatpush1.msra.mxu0 0.0
        %517 = vmatprep.subr.mxu0 0.0
        %518 = vmatpush1.msra.mxu0 %v405
        %519 = vmatprep.subr.mxu0 0.0
        %520 = vmatpush1.msra.mxu0 %v404
        %521 = vmatprep.subr.mxu0 0.0
        %522 = vmatpush1.msra.mxu0 %v403
        %523 = vmatprep.subr.mxu0 0.0
        %524 = vmatpush1.msra.mxu0 %v402
        %525 = vmatprep.subr.mxu0 0.0
        %526 = vmatpush1.msra.mxu0 %v401
        %527 = vmatprep.subr.mxu0 0.0
        %528 = vmatpush1.msra.mxu0 %v400
        %529 = vmatprep.subr.mxu0 0.0
        %530 = vmatpush1.msra.mxu0 %v399
        %531 = vmatprep.subr.mxu0 0.0
        %532 = vmatpush1.msra.mxu0 %v398
        %533 = vmatprep.subr.mxu0 0.0
        %534 = vmatpush2.msra.mxu0 0.0
        %535 = vmatprep.subr.mxu0 0.0
        %536 = vmatpush2.msra.mxu0 0.0
        %537 = vmatprep.subr.mxu0 0.0
        %538 = vmatpush2.msra.mxu0 0.0
        %539 = vmatprep.subr.mxu0 0.0
        %540 = vmatpush2.msra.mxu0 0.0
        %541 = vmatprep.subr.mxu0 0.0
        %542 = vmatpush2.msra.mxu0 0.0
        %543 = vmatprep.subr.mxu0 0.0
        %544 = vmatpush2.msra.mxu0 0.0
        %545 = vmatprep.subr.mxu0 0.0
        %546 = vmatpush2.msra.mxu0 0.0
        %547 = vmatprep.subr.mxu0 0.0
        %548 = vmatpush2.msra.mxu0 0.0
        %549 = vmatprep.subr.mxu0 0.0
        %550 = vmatpush2.msra.mxu0 0.0
        %551 = vmatprep.subr.mxu0 0.0
        %552 = vmatpush2.msra.mxu0 0.0
        %553 = vmatprep.subr.mxu0 0.0
        %554 = vmatpush2.msra.mxu0 0.0
        %555 = vmatprep.subr.mxu0 0.0
        %556 = vmatpush2.msra.mxu0 0.0
        %557 = vmatprep.subr.mxu0 0.0
        %558 = vmatpush2.msra.mxu0 0.0
        %559 = vmatprep.subr.mxu0 0.0
        %560 = vmatpush2.msra.mxu0 0.0
        %561 = vmatprep.subr.mxu0 0.0
        %562 = vmatpush2.msra.mxu0 0.0
        %563 = vmatprep.subr.mxu0 0.0
        %564 = vmatpush2.msra.mxu0 0.0
        %565 = vmatprep.mubr.f32.mxu0 0.0
        %566 = vmatmul.mubr.f32.gmra.mxu0 %v496
        %v567 = vpop.f32.mrf.mxu0
        %v568 = vadd.f32 %v487, %v567
        %v569 = vpop.f32.mrf.mxu0
        %570 = vmatprep.mubr.f32.mxu0 0.0
        %571 = vmatmul.mubr.f32.gmra.mxu0 %v499
        %v572 = vpop.f32.mrf.mxu0
        %v573 = vadd.f32 %v492, %v572
        %v574 = vpop.f32.mrf.mxu0
        %575 = vdwg.mxu0
        %v576 = vld [vmem:[%s4] sm:$0x1]
        %v578 = vlaneseq
        %v579 = vshrl.u32 %v578, 7
        %v580 = vsub.s32 0, %v579
        %v581 = vrot.slane %v576, %v580
        %v583 = vmul.f32 %v384, %v581
        %v584 = vmul.f32 %v385, %v581
        %v585 = vsub.f32 %v568, %v583
        %v586 = vsub.f32 %v573, %v584
        %v587 = vmul.f32 %v585, %v396
        %v588 = vmul.f32 %v586, %v397
        %v589 = vld [vmem:[%s5] sm:$0x1]
        %v591 = vlaneseq
        %v592 = vshrl.u32 %v591, 7
        %v593 = vsub.s32 0, %v592
        %v594 = vrot.slane %v589, %v593
        %v596 = vadd.f32 %v587, %v594
        %v597 = vadd.f32 %v588, %v594
        %598 = vst.msk [vmem:[%s345] sm:$0xff] %vm351, %v596
        %599 = vst.msk [vmem:[%s345 + $0x8] sm:$0xff] %vm351, %v597
        %s600 = smul.u32 2, %s24
        %p601 = scmp.lt.s32.totalorder %s600, 15
        %s602 = scalar_select %p601, %s600, 15
        %s603 = smul.addr %s602, 8
        %s604 = scalar_lea.vmem %s6, %s603
        // Predicated region
        $region61: #{tpu_custom_call.1} parent=43 // pred_check
          %p605 = pneg %p178
        $region62: #{tpu_custom_call.1} parent=43 // pred_check_branch
          %607 = sbr.rel (%p605) target = $region64
        $region63: #{tpu_custom_call.1} parent=43 // pred_region
          %s608 = smul.u32 2, %s24
        $region64: #{tpu_custom_call.1} parent=43 // pred_fallthru
          _
      $region44: #{tpu_custom_call.1} parent=5 // pred_fallthru
        _
      %p609 = scmp.le.s32.totalorder 2, %s19
      // Predicated region
      $region65: #{tpu_custom_call.1} parent=5 // pred_check
        %p610 = pneg %p609
      $region66: #{tpu_custom_call.1} parent=5 // pred_check_branch
        %612 = sbr.rel (%p610) target = $region68
      $region67: #{tpu_custom_call.1} parent=5 // pred_region
        %s613 = ssub.s32 %s19, 2
        // Predicated region
        $region69: #{tpu_custom_call.1} parent=67 // pred_check
          %p614 = pneg %p184
        $region70: #{tpu_custom_call.1} parent=67 // pred_check_branch
          %616 = sbr.rel (%p614) target = $region72
        $region71: #{tpu_custom_call.1} parent=67 // pred_region
          %s617 = smul.u32 2, %s25
          %p618 = scmp.lt.s32.totalorder %s617, 15
          %s619 = scalar_select %p618, %s617, 15
          %s620 = smul.addr %s619, 8
          %s621 = scalar_lea.vmem %s6, %s620
        $region72: #{tpu_custom_call.1} parent=67 // pred_fallthru
          _
      $region68: #{tpu_custom_call.1} parent=5 // pred_fallthru
        _
    $region6: #{tpu_custom_call.1} parent=1 // loop_footer
      %s23 = sadd.s32 1, %s19
    $region7: #{tpu_custom_call.1} parent=1 // loop_footer_branch
      %18 = sbr.rel target = $region3
    $region8: #{tpu_custom_call.1} parent=1 // loop_exit
      _
    %622 = vsyncpa [#allocation3], 1
    %s623 = scalar_lea.sflag [#allocation3], 1
    %624 = vsyncpa %s623, 1
    %625 = vsyncpa [#allocation5], 1
    %s626 = scalar_lea.sflag [#allocation5], 1
    %627 = vsyncpa %s626, 1
    %628 = vsyncpa [#allocation8], 1

</llo_original>
